<compile_context>
chip_gen: v5e
topology: v5e:2x2
jax: 0.10.0
libtpu: 0.0.40
codegen_flags: <defaults>
</compile_context>

<pallas_src>
import functools
import math

import jax
import jax.numpy as jnp
from jax import lax
from jax.experimental import pallas as pl
from jax.experimental.pallas import tpu as pltpu

LOG_STD_MIN = -2.0
LOG_STD_MAX = 20.0

_LANE = 128
_SUBLANE = 8


def _round_up(x, m):
    return ((x + m - 1) // m) * m


def _cdiv(a, b):
    return -(-a // b)


# ---------------------------------------------------------------------------
# One-time parameter preparation (hoisted out of the per-call path).
# ---------------------------------------------------------------------------
def prepare_actor_params(params, weight_dtype=jnp.bfloat16):
    """Pad / fuse the actor parameters once.

    Builds:
      * w1  (obs_dim, h1_pad)  -- first dim unpadded so obs needs no lane pad
      * w2  (h1_pad, h2_pad)
      * fused head slab [mu | log_std]  (h2_pad, 2*a_pad)
      * mu-only head slab (h2_pad, a_pad) for the deterministic/no-logprob path
    Weights cast to `weight_dtype` (bf16 default, native MXU input on all
    generations); biases kept f32 (added after the f32-accumulating matmul).
    """
    w1, b1, w2, b2, wmu, bmu, wls, bls = params
    obs_dim, h1 = w1.shape
    h2 = w2.shape[1]
    act_dim = wmu.shape[1]

    h1_pad = _round_up(h1, _LANE)
    h2_pad = _round_up(h2, _LANE)
    a_pad = _round_up(act_dim + 1, _LANE)   # +1: logp owns its own output lane

    f32 = jnp.float32

    def pad2(a, rows, cols, dt):
        out = jnp.zeros((rows, cols), dt)
        return out.at[:a.shape[0], :a.shape[1]].set(a.astype(dt))

    w1_p = pad2(w1, obs_dim, h1_pad, weight_dtype)
    b1_p = pad2(b1, 1, h1_pad, f32)
    w2_p = pad2(w2, h1_pad, h2_pad, weight_dtype)
    b2_p = pad2(b2, 1, h2_pad, f32)

    wh_full = jnp.zeros((h2_pad, 2 * a_pad), weight_dtype)
    wh_full = wh_full.at[:h2, :act_dim].set(wmu.astype(weight_dtype))
    wh_full = wh_full.at[:h2, a_pad:a_pad + act_dim].set(wls.astype(weight_dtype))
    bh_full = jnp.zeros((1, 2 * a_pad), f32)
    bh_full = bh_full.at[:, :act_dim].set(bmu.astype(f32))
    bh_full = bh_full.at[:, a_pad:a_pad + act_dim].set(bls.astype(f32))

    wh_mu = pad2(wmu, h2_pad, a_pad, weight_dtype)
    bh_mu = pad2(bmu, 1, a_pad, f32)

    return dict(
        w1=w1_p, b1=b1_p, w2=w2_p, b2=b2_p,
        wh_full=wh_full, bh_full=bh_full, wh_mu=wh_mu, bh_mu=bh_mu,
        obs_dim=obs_dim, act_dim=act_dim,
        h1_pad=h1_pad, h2_pad=h2_pad, a_pad=a_pad,
        weight_dtype=weight_dtype)


# ---------------------------------------------------------------------------
# Kernel
# ---------------------------------------------------------------------------
def _actor_kernel(*refs, act_limit, act_dim, a_pad, deterministic,
                  with_logprob, mm_dtype):
    """One batch tile: ReLU trunk, fused heads, sample, tanh squash, logp."""
    if deterministic:
        (obs_ref, w1_ref, b1_ref, w2_ref, b2_ref, wh_ref, bh_ref,
         out_ref) = refs
        eps_ref = None
    else:
        (obs_ref, w1_ref, b1_ref, w2_ref, b2_ref, wh_ref, bh_ref, eps_ref,
         out_ref) = refs

    f32 = jnp.float32

    # Trunk: Linear -> ReLU -> Linear -> ReLU (output_activation == activation).
    # Matmul operands in mm_dtype (bf16 MXU-native), accumulate f32, keep all
    # elementwise math f32.
    x = obs_ref[...].astype(mm_dtype)
    h = jnp.dot(x, w1_ref[...], preferred_element_type=f32) + b1_ref[...]
    h = jnp.maximum(h, 0.0)
    h = jnp.dot(h.astype(mm_dtype), w2_ref[...],
                preferred_element_type=f32) + b2_ref[...]
    h = jnp.maximum(h, 0.0)

    # Head slab: fused [mu | log_std] or mu-only (deterministic, no logprob).
    heads = jnp.dot(h.astype(mm_dtype), wh_ref[...],
                    preferred_element_type=f32) + bh_ref[...]
    mu = heads if heads.shape[1] == a_pad else heads[:, :a_pad]

    need_log_std = with_logprob or (not deterministic)
    if need_log_std:
        log_std = jnp.clip(heads[:, a_pad:], LOG_STD_MIN, LOG_STD_MAX)

    if deterministic:
        pi = mu
    else:
        std = jnp.exp(log_std)                     # only when sampling
        # eps arrives lane-unpadded (tile_b, act_dim).  Widen to a_pad lanes
        # with a tiny identity-selector matmul (MXU idle; avoids unaligned
        # lane concat and the host-side 16x eps padding).
        eps_small = eps_ref[...]
        row = lax.broadcasted_iota(jnp.int32, (act_dim, a_pad), 0)
        col = lax.broadcasted_iota(jnp.int32, (act_dim, a_pad), 1)
        sel = (row == col).astype(f32)
        eps = jnp.dot(eps_small, sel, preferred_element_type=f32)
        pi = mu + std * eps                        # padded lanes stay exactly 0

    if with_logprob:
        # Shared transcendental: t = exp(-2|pi|)
        #   tanh(pi)        = sign(pi) * (1 - t) / (1 + t)
        #   softplus(-2 pi) = log1p(t) + max(-2 pi, 0)      (numerically stable)
        t = jnp.exp(-2.0 * jnp.abs(pi))
        y = 1.0 + t
        r = pl.reciprocal(y, approx=True)
        r = r * (2.0 - y * r)                      # one Newton step (cheap VPU)
        tanh_pi = jnp.where(pi >= 0, 1.0, -1.0) * (1.0 - t) * r
        act = act_limit * tanh_pi

        softplus = jnp.log1p(t) + 2.0 * jnp.maximum(-pi, 0.0)
        # z = (pi - mu) / std == eps exactly, so no vector divide is needed.
        zsq = jnp.zeros_like(mu) if deterministic else eps * eps
        per_lane = (-0.5 * zsq - log_std - 0.5 * math.log(2.0 * math.pi)
                    - 2.0 * (math.log(2.0) - pi - softplus))
        lane = lax.broadcasted_iota(jnp.int32, per_lane.shape, 1)
        per_lane = jnp.where(lane < act_dim, per_lane, 0.0)   # mask padded lanes
        logp = jnp.sum(per_lane, axis=-1, keepdims=True)      # one XLU reduce
        # Pack action lanes (0..act_dim-1) and logp (lane act_dim) into one
        # dense 128-lane block -> single unmasked store.
        packed = jnp.where(lane == act_dim, logp, act)
    else:
        packed = act_limit * jnp.tanh(pi)

    out_ref[...] = packed.astype(out_ref.dtype)


# ---------------------------------------------------------------------------
# Wrapper
# ---------------------------------------------------------------------------
def squashed_gaussian_actor(obs, prep, eps=None, *, act_limit,
                            deterministic=False, with_logprob=True,
                            tile_b=None):
    """SAC actor forward in one Pallas TPU kernel.

    `prep` = prepare_actor_params(params).  Returns
    (pi_action [B, act_dim], logp_pi [B] or None).
    """
    obs_dim = prep["obs_dim"]
    act_dim = prep["act_dim"]
    h1_pad = prep["h1_pad"]
    h2_pad = prep["h2_pad"]
    a_pad = prep["a_pad"]
    mm_dtype = prep["weight_dtype"]

    B = obs.shape[0]
    assert obs.shape[1] == obs_dim
    if (not deterministic) and eps is None:
        raise ValueError("eps is required when deterministic=False")

    # Batch tiling: tiles up to 1024 rows to amortize per-grid-step overhead,
    # but >= 2 grid steps once B > 8 so both v7x TensorCores are engaged
    # (batch axis is "parallel"; no effect on single-TC v5e/v6e).
    if tile_b is None:
        b8 = _round_up(max(B, 1), _SUBLANE)
        if b8 <= _SUBLANE:
            tile_b = b8
        else:
            n_steps = max(2, _cdiv(b8, 1024))
            tile_b = _round_up(_cdiv(b8, n_steps), _SUBLANE)
    else:
        tile_b = _round_up(tile_b, _SUBLANE)
    b_pad = _round_up(B, tile_b)
    grid = b_pad // tile_b

    def pad_rows(a):
        if a.shape[0] == b_pad:
            return a
        return jnp.pad(a, ((0, b_pad - a.shape[0]), (0, 0)))

    obs_p = pad_rows(obs.astype(jnp.float32))

    need_log_std = with_logprob or (not deterministic)
    wh = prep["wh_full"] if need_log_std else prep["wh_mu"]
    bh = prep["bh_full"] if need_log_std else prep["bh_mu"]
    head_w = wh.shape[1]

    batch_map = lambda i: (i, 0)
    const_map = lambda i: (0, 0)   # weights resident in VMEM across batch tiles
    # NOTE: for large hidden sizes consider pipeline_mode=pl.Buffered(1) on the
    # constant-index weight specs (v7x VMEM headroom); irrelevant at this size.

    in_specs = [
        pl.BlockSpec((tile_b, obs_dim), batch_map),   # obs (lane-unpadded)
        pl.BlockSpec((obs_dim, h1_pad), const_map),   # w1
        pl.BlockSpec((1, h1_pad), const_map),         # b1
        pl.BlockSpec((h1_pad, h2_pad), const_map),    # w2
        pl.BlockSpec((1, h2_pad), const_map),         # b2
        pl.BlockSpec((h2_pad, head_w), const_map),    # head W (fused or mu-only)
        pl.BlockSpec((1, head_w), const_map),         # head b
    ]
    args = [obs_p, prep["w1"], prep["b1"], prep["w2"], prep["b2"], wh, bh]
    if not deterministic:
        in_specs.append(pl.BlockSpec((tile_b, act_dim), batch_map))  # eps
        args.append(pad_rows(eps.astype(jnp.float32)))

    kernel = functools.partial(
        _actor_kernel, act_limit=float(act_limit), act_dim=act_dim,
        a_pad=a_pad, deterministic=bool(deterministic),
        with_logprob=bool(with_logprob), mm_dtype=mm_dtype)

    packed = pl.pallas_call(
        kernel,
        out_shape=jax.ShapeDtypeStruct((b_pad, a_pad), jnp.float32),
        grid=(grid,),
        in_specs=in_specs,
        out_specs=pl.BlockSpec((tile_b, a_pad), batch_map),
        compiler_params=pltpu.CompilerParams(
            dimension_semantics=("parallel",)),
    )(*args)

    pi_action = packed[:B, :act_dim]
    logp_pi = packed[:B, act_dim] if with_logprob else None
    return pi_action, logp_pi


# ---------------------------------------------------------------------------
# Synthetic parameters + pure-JAX reference
# ---------------------------------------------------------------------------
def init_params(key, obs_dim, hidden_sizes, act_dim):
    """Deterministic synthetic parameters (shapes match the PyTorch module)."""
    sizes = [obs_dim] + list(hidden_sizes)
    keys = jax.random.split(key, 2 * (len(sizes) - 1) + 4)
    params = []
    ki = 0
    for j in range(len(sizes) - 1):           # trunk linears
        bound = 1.0 / math.sqrt(sizes[j])
        w = jax.random.uniform(keys[ki], (sizes[j], sizes[j + 1]),
                               jnp.float32, -bound, bound); ki += 1
        b = jax.random.uniform(keys[ki], (1, sizes[j + 1]),
                               jnp.float32, -bound, bound); ki += 1
        params += [w, b]
    bound = 1.0 / math.sqrt(hidden_sizes[-1])
    for _ in range(2):                        # mu and log_std heads
        w = jax.random.uniform(keys[ki], (hidden_sizes[-1], act_dim),
                               jnp.float32, -bound, bound); ki += 1
        b = jax.random.uniform(keys[ki], (1, act_dim),
                               jnp.float32, -bound, bound); ki += 1
        params += [w, b]
    return tuple(params)


def _reference(obs, params, eps, *, act_limit, deterministic=False,
               with_logprob=True):
    """Pure-JAX reference mirroring the PyTorch module."""
    w1, b1, w2, b2, wmu, bmu, wls, bls = params
    h = jax.nn.relu(obs @ w1 + b1)
    h = jax.nn.relu(h @ w2 + b2)
    mu = h @ wmu + bmu
    log_std = jnp.clip(h @ wls + bls, LOG_STD_MIN, LOG_STD_MAX)
    std = jnp.exp(log_std)
    pi = mu if deterministic else mu + std * eps
    logp = None
    if with_logprob:
        z = (pi - mu) / std
        logp = jnp.sum(-0.5 * z * z - log_std - 0.5 * math.log(2.0 * math.pi),
                       axis=-1)
        logp = logp - jnp.sum(
            2.0 * (math.log(2.0) - pi - jax.nn.softplus(-2.0 * pi)), axis=-1)
    return act_limit * jnp.tanh(pi), logp


if __name__ == "__main__":
    B = 4
    obs_dim = 16
    hidden_sizes = (64, 64)
    act_dim = 8
    act_limit = 2.0

    key = jax.random.PRNGKey(0)
    k_obs, k_eps, k_par, k_obs2, k_eps2 = jax.random.split(key, 5)

    obs = jax.random.normal(k_obs, (B, obs_dim), jnp.float32)
    eps = jax.random.normal(k_eps, (B, act_dim), jnp.float32)  # rsample noise
    params = init_params(k_par, obs_dim, hidden_sizes, act_dim)

    # One-time (hoisted) weight padding + head fusion.
    prep_f32 = prepare_actor_params(params, weight_dtype=jnp.float32)
    prep_bf16 = prepare_actor_params(params)   # bf16 weights (default)

    # 1) Stochastic path with log-prob (training): strict f32 check.
    pi_action, logp_pi = squashed_gaussian_actor(
        obs, prep_f32, eps, act_limit=act_limit)
    jax.block_until_ready((pi_action, logp_pi))
    ref_act, ref_logp = _reference(obs, params, eps, act_limit=act_limit)
    assert pi_action.shape == (B, act_dim) and logp_pi.shape == (B,)
    assert bool(jnp.all(jnp.isfinite(pi_action)))
    assert bool(jnp.all(jnp.isfinite(logp_pi)))
    assert bool(jnp.all(jnp.abs(pi_action) <= act_limit + 1e-5))
    assert bool(jnp.allclose(pi_action, ref_act, atol=1e-3, rtol=1e-3))
    assert bool(jnp.allclose(logp_pi, ref_logp, atol=1e-3, rtol=1e-3))

    # 2) Multi-tile batch (grid > 1, padded batch rows).
    B2 = 20
    obs2 = jax.random.normal(k_obs2, (B2, obs_dim), jnp.float32)
    eps2 = jax.random.normal(k_eps2, (B2, act_dim), jnp.float32)
    act2, logp2 = squashed_gaussian_actor(obs2, prep_f32, eps2,
                                          act_limit=act_limit)
    jax.block_until_ready((act2, logp2))
    r_act2, r_logp2 = _reference(obs2, params, eps2, act_limit=act_limit)
    assert bool(jnp.allclose(act2, r_act2, atol=1e-3, rtol=1e-3))
    assert bool(jnp.allclose(logp2, r_logp2, atol=1e-3, rtol=1e-3))

    # 3) Deterministic, no-logprob path (mu-only head slab, no eps stream).
    det_act, det_logp = squashed_gaussian_actor(
        obs, prep_f32, act_limit=act_limit,
        deterministic=True, with_logprob=False)
    jax.block_until_ready(det_act)
    ref_det, _ = _reference(obs, params, eps, act_limit=act_limit,
                            deterministic=True, with_logprob=False)
    assert det_logp is None
    assert bool(jnp.allclose(det_act, ref_det, atol=1e-3, rtol=1e-3))

    # 4) Stochastic, no-logprob path (exploration).
    ex_act, ex_logp = squashed_gaussian_actor(
        obs, prep_f32, eps, act_limit=act_limit, with_logprob=False)
    jax.block_until_ready(ex_act)
    assert ex_logp is None
    assert bool(jnp.allclose(ex_act, ref_act, atol=1e-3, rtol=1e-3))

    # 5) bf16-weight path (default): explicit tolerance vs a reference that
    #    uses bf16-rounded weights (isolates activation-cast / tanh-formula
    #    error, which must stay small).
    bf_act, bf_logp = squashed_gaussian_actor(
        obs, prep_bf16, eps, act_limit=act_limit)
    jax.block_until_ready((bf_act, bf_logp))
    w1, b1, w2, b2, wmu, bmu, wls, bls = params
    q = lambda w: w.astype(jnp.bfloat16).astype(jnp.float32)
    params_q = (q(w1), b1, q(w2), b2, q(wmu), bmu, q(wls), bls)
    q_act, q_logp = _reference(obs, params_q, eps, act_limit=act_limit)
    assert bool(jnp.all(jnp.isfinite(bf_act)))
    assert bool(jnp.all(jnp.isfinite(bf_logp)))
    assert bool(jnp.allclose(bf_act, q_act, atol=3e-2, rtol=3e-2))
    assert bool(jnp.allclose(bf_logp, q_logp, atol=1e-1, rtol=3e-2))

    print("KERNEL_OK")
</pallas_src>

<mosaic_0001>
module attributes {stable_mosaic.version = 11 : i64} {
  func.func @_actor_kernel(%arg0: i32, %arg1: memref<8x16xf32, #tpu.memory_space<vmem>>, %arg2: memref<16x128xf32, #tpu.memory_space<vmem>>, %arg3: memref<1x128xf32, #tpu.memory_space<vmem>>, %arg4: memref<128x128xf32, #tpu.memory_space<vmem>>, %arg5: memref<1x128xf32, #tpu.memory_space<vmem>>, %arg6: memref<128x256xf32, #tpu.memory_space<vmem>>, %arg7: memref<1x256xf32, #tpu.memory_space<vmem>>, %arg8: memref<8x8xf32, #tpu.memory_space<vmem>>, %arg9: memref<8x128xf32, #tpu.memory_space<vmem>>) attributes {dimension_semantics = [#tpu.dimension_semantics<parallel>], iteration_bounds = array<i64: 1>, scalar_prefetch = 0 : i64, scratch_operands = 0 : i64, tpu.core_type = #tpu.core_type<tc>, window_params = [{transform_indices = @transform_0, window_bounds = array<i64: 8, 16>}, {pipeline_mode = #tpu.pipeline_mode<synchronous>, transform_indices = @transform_1, window_bounds = array<i64: 16, 128>}, {pipeline_mode = #tpu.pipeline_mode<synchronous>, transform_indices = @transform_2, window_bounds = array<i64: 1, 128>}, {pipeline_mode = #tpu.pipeline_mode<synchronous>, transform_indices = @transform_3, window_bounds = array<i64: 128, 128>}, {pipeline_mode = #tpu.pipeline_mode<synchronous>, transform_indices = @transform_4, window_bounds = array<i64: 1, 128>}, {pipeline_mode = #tpu.pipeline_mode<synchronous>, transform_indices = @transform_5, window_bounds = array<i64: 128, 256>}, {pipeline_mode = #tpu.pipeline_mode<synchronous>, transform_indices = @transform_6, window_bounds = array<i64: 1, 256>}, {transform_indices = @transform_7, window_bounds = array<i64: 8, 8>}, {transform_indices = @transform_8, window_bounds = array<i64: 8, 128>}]} {
    %c0 = arith.constant 0 : index
    %c0_0 = arith.constant 0 : index
    %0 = vector.load %arg1[%c0, %c0_0] : memref<8x16xf32, #tpu.memory_space<vmem>>, vector<8x16xf32>
    %c0_1 = arith.constant 0 : index
    %c0_2 = arith.constant 0 : index
    %1 = vector.load %arg2[%c0_1, %c0_2] : memref<16x128xf32, #tpu.memory_space<vmem>>, vector<16x128xf32>
    %cst = arith.constant dense<0.000000e+00> : vector<8x128xf32>
    %2 = tpu.matmul %0, %1, %cst {dimension_numbers = #tpu.dot_dimension_numbers<[1], [0], [0], [1], [0, 0, 1, 1], [], []>} : vector<8x16xf32>, vector<16x128xf32>, vector<8x128xf32> -> vector<8x128xf32>
    %c0_3 = arith.constant 0 : index
    %c0_4 = arith.constant 0 : index
    %3 = vector.load %arg3[%c0_3, %c0_4] : memref<1x128xf32, #tpu.memory_space<vmem>>, vector<1x128xf32>
    %4 = vector.broadcast %3 : vector<1x128xf32> to vector<8x128xf32>
    %5 = arith.addf %2, %4 : vector<8x128xf32>
    %cst_5 = arith.constant 0.000000e+00 : f32
    %6 = vector.broadcast %cst_5 : f32 to vector<8x128xf32>
    %7 = arith.maximumf %5, %6 : vector<8x128xf32>
    %c0_6 = arith.constant 0 : index
    %c0_7 = arith.constant 0 : index
    %8 = vector.load %arg4[%c0_6, %c0_7] : memref<128x128xf32, #tpu.memory_space<vmem>>, vector<128x128xf32>
    %cst_8 = arith.constant dense<0.000000e+00> : vector<8x128xf32>
    %9 = tpu.matmul %7, %8, %cst_8 {dimension_numbers = #tpu.dot_dimension_numbers<[1], [0], [0], [1], [0, 0, 1, 1], [], []>} : vector<8x128xf32>, vector<128x128xf32>, vector<8x128xf32> -> vector<8x128xf32>
    %c0_9 = arith.constant 0 : index
    %c0_10 = arith.constant 0 : index
    %10 = vector.load %arg5[%c0_9, %c0_10] : memref<1x128xf32, #tpu.memory_space<vmem>>, vector<1x128xf32>
    %11 = vector.broadcast %10 : vector<1x128xf32> to vector<8x128xf32>
    %12 = arith.addf %9, %11 : vector<8x128xf32>
    %cst_11 = arith.constant 0.000000e+00 : f32
    %13 = vector.broadcast %cst_11 : f32 to vector<8x128xf32>
    %14 = arith.maximumf %12, %13 : vector<8x128xf32>
    %c0_12 = arith.constant 0 : index
    %c0_13 = arith.constant 0 : index
    %15 = vector.load %arg6[%c0_12, %c0_13] : memref<128x256xf32, #tpu.memory_space<vmem>>, vector<128x256xf32>
    %cst_14 = arith.constant dense<0.000000e+00> : vector<8x256xf32>
    %16 = tpu.matmul %14, %15, %cst_14 {dimension_numbers = #tpu.dot_dimension_numbers<[1], [0], [0], [1], [0, 0, 1, 1], [], []>} : vector<8x128xf32>, vector<128x256xf32>, vector<8x256xf32> -> vector<8x256xf32>
    %c0_15 = arith.constant 0 : index
    %c0_16 = arith.constant 0 : index
    %17 = vector.load %arg7[%c0_15, %c0_16] : memref<1x256xf32, #tpu.memory_space<vmem>>, vector<1x256xf32>
    %18 = vector.broadcast %17 : vector<1x256xf32> to vector<8x256xf32>
    %19 = arith.addf %16, %18 : vector<8x256xf32>
    %20 = vector.extract_strided_slice %19 {offsets = [0, 0], sizes = [8, 128], strides = [1, 1]} : vector<8x256xf32> to vector<8x128xf32>
    %21 = vector.extract_strided_slice %19 {offsets = [0, 128], sizes = [8, 128], strides = [1, 1]} : vector<8x256xf32> to vector<8x128xf32>
    %cst_17 = arith.constant -2.000000e+00 : f32
    %cst_18 = arith.constant 2.000000e+01 : f32
    %22 = vector.broadcast %cst_17 : f32 to vector<8x128xf32>
    %23 = arith.maximumf %22, %21 : vector<8x128xf32>
    %24 = vector.broadcast %cst_18 : f32 to vector<8x128xf32>
    %25 = arith.minimumf %24, %23 : vector<8x128xf32>
    %26 = math.exp %25 : vector<8x128xf32>
    %c0_19 = arith.constant 0 : index
    %c0_20 = arith.constant 0 : index
    %27 = vector.load %arg8[%c0_19, %c0_20] : memref<8x8xf32, #tpu.memory_space<vmem>>, vector<8x8xf32>
    %28 = tpu.iota {dimensions = array<i32: 0>} : vector<8x128xi32>
    %29 = tpu.iota {dimensions = array<i32: 1>} : vector<8x128xi32>
    %30 = arith.cmpi eq, %28, %29 : vector<8x128xi32>
    %31 = arith.extui %30 : vector<8x128xi1> to vector<8x128xi32>
    %32 = arith.sitofp %31 : vector<8x128xi32> to vector<8x128xf32>
    %cst_21 = arith.constant dense<0.000000e+00> : vector<8x128xf32>
    %33 = tpu.matmul %27, %32, %cst_21 {dimension_numbers = #tpu.dot_dimension_numbers<[1], [0], [0], [1], [0, 0, 1, 1], [], []>} : vector<8x8xf32>, vector<8x128xf32>, vector<8x128xf32> -> vector<8x128xf32>
    %34 = arith.mulf %26, %33 : vector<8x128xf32>
    %35 = arith.addf %20, %34 : vector<8x128xf32>
    %36 = math.absf %35 : vector<8x128xf32>
    %cst_22 = arith.constant -2.000000e+00 : f32
    %37 = vector.broadcast %cst_22 : f32 to vector<8x128xf32>
    %38 = arith.mulf %37, %36 : vector<8x128xf32>
    %39 = math.exp %38 : vector<8x128xf32>
    %cst_23 = arith.constant 1.000000e+00 : f32
    %40 = vector.broadcast %cst_23 : f32 to vector<8x128xf32>
    %41 = arith.addf %40, %39 : vector<8x128xf32>
    %42 = tpu.reciprocal %41 {approx = true} : vector<8x128xf32> -> vector<8x128xf32>
    %43 = arith.mulf %41, %42 : vector<8x128xf32>
    %cst_24 = arith.constant 2.000000e+00 : f32
    %44 = vector.broadcast %cst_24 : f32 to vector<8x128xf32>
    %45 = arith.subf %44, %43 : vector<8x128xf32>
    %46 = arith.mulf %42, %45 : vector<8x128xf32>
    %cst_25 = arith.constant 0.000000e+00 : f32
    %47 = vector.broadcast %cst_25 : f32 to vector<8x128xf32>
    %48 = arith.cmpf oge, %35, %47 : vector<8x128xf32>
    %cst_26 = arith.constant 1.000000e+00 : f32
    %cst_27 = arith.constant -1.000000e+00 : f32
    %49 = vector.broadcast %cst_26 : f32 to vector<8x128xf32>
    %50 = vector.broadcast %cst_27 : f32 to vector<8x128xf32>
    %51 = arith.select %48, %49, %50 : vector<8x128xi1>, vector<8x128xf32>
    %cst_28 = arith.constant 1.000000e+00 : f32
    %52 = vector.broadcast %cst_28 : f32 to vector<8x128xf32>
    %53 = arith.subf %52, %39 : vector<8x128xf32>
    %54 = arith.mulf %51, %53 : vector<8x128xf32>
    %55 = arith.mulf %54, %46 : vector<8x128xf32>
    %cst_29 = arith.constant 2.000000e+00 : f32
    %56 = vector.broadcast %cst_29 : f32 to vector<8x128xf32>
    %57 = arith.mulf %56, %55 : vector<8x128xf32>
    %58 = math.log1p %39 : vector<8x128xf32>
    %cst_30 = arith.constant 0.000000e+00 : f32
    %59 = vector.broadcast %cst_30 : f32 to vector<8x128xf32>
    %60 = arith.subf %59, %35 : vector<8x128xf32>
    %cst_31 = arith.constant 0.000000e+00 : f32
    %61 = vector.broadcast %cst_31 : f32 to vector<8x128xf32>
    %62 = arith.maximumf %60, %61 : vector<8x128xf32>
    %cst_32 = arith.constant 2.000000e+00 : f32
    %63 = vector.broadcast %cst_32 : f32 to vector<8x128xf32>
    %64 = arith.mulf %63, %62 : vector<8x128xf32>
    %65 = arith.addf %58, %64 : vector<8x128xf32>
    %66 = arith.mulf %33, %33 : vector<8x128xf32>
    %cst_33 = arith.constant -5.000000e-01 : f32
    %67 = vector.broadcast %cst_33 : f32 to vector<8x128xf32>
    %68 = arith.mulf %67, %66 : vector<8x128xf32>
    %69 = arith.subf %68, %25 : vector<8x128xf32>
    %cst_34 = arith.constant 0.918938517 : f32
    %70 = vector.broadcast %cst_34 : f32 to vector<8x128xf32>
    %71 = arith.subf %69, %70 : vector<8x128xf32>
    %cst_35 = arith.constant 0.693147182 : f32
    %72 = vector.broadcast %cst_35 : f32 to vector<8x128xf32>
    %73 = arith.subf %72, %35 : vector<8x128xf32>
    %74 = arith.subf %73, %65 : vector<8x128xf32>
    %cst_36 = arith.constant 2.000000e+00 : f32
    %75 = vector.broadcast %cst_36 : f32 to vector<8x128xf32>
    %76 = arith.mulf %75, %74 : vector<8x128xf32>
    %77 = arith.subf %71, %76 : vector<8x128xf32>
    %78 = tpu.iota {dimensions = array<i32: 1>} : vector<8x128xi32>
    %c8_i32 = arith.constant 8 : i32
    %79 = vector.broadcast %c8_i32 : i32 to vector<8x128xi32>
    %80 = arith.cmpi slt, %78, %79 : vector<8x128xi32>
    %cst_37 = arith.constant 0.000000e+00 : f32
    %81 = vector.broadcast %cst_37 : f32 to vector<8x128xf32>
    %82 = arith.select %80, %77, %81 : vector<8x128xi1>, vector<8x128xf32>
    %cst_38 = arith.constant dense<0.000000e+00> : vector<8xf32>
    %83 = vector.multi_reduction <add>, %82, %cst_38 [1] : vector<8x128xf32> to vector<8xf32>
    %84 = vector.shape_cast %83 : vector<8xf32> to vector<8x1xf32>
    %c8_i32_39 = arith.constant 8 : i32
    %85 = vector.broadcast %c8_i32_39 : i32 to vector<8x128xi32>
    %86 = arith.cmpi eq, %78, %85 : vector<8x128xi32>
    %87 = vector.shape_cast %84 : vector<8x1xf32> to vector<8x1xf32>
    %88 = vector.broadcast %87 : vector<8x1xf32> to vector<8x128xf32>
    %89 = arith.select %86, %88, %57 : vector<8x128xi1>, vector<8x128xf32>
    %c0_40 = arith.constant 0 : index
    %c0_41 = arith.constant 0 : index
    %90 = vector.load %arg9[%c0_40, %c0_41] : memref<8x128xf32, #tpu.memory_space<vmem>>, vector<8x128xf32>
    tpu.vector_store %arg9[%c0_40, %c0_41], %89 {strides = array<i32>} : memref<8x128xf32, #tpu.memory_space<vmem>>, vector<8x128xf32>,
    return
  }
  func.func @transform_0(%arg0: i32) -> (i32, i32) {
    %c0_i32 = arith.constant 0 : i32
    %c0_i32_0 = arith.constant 0 : i32
    return %arg0, %c0_i32 : i32, i32
  }
  func.func @transform_1(%arg0: i32) -> (i32, i32) {
    %c0_i32 = arith.constant 0 : i32
    %c0_i32_0 = arith.constant 0 : i32
    %c0_i32_1 = arith.constant 0 : i32
    return %c0_i32, %c0_i32_0 : i32, i32
  }
  func.func @transform_2(%arg0: i32) -> (i32, i32) {
    %c0_i32 = arith.constant 0 : i32
    %c0_i32_0 = arith.constant 0 : i32
    %c0_i32_1 = arith.constant 0 : i32
    return %c0_i32, %c0_i32_0 : i32, i32
  }
  func.func @transform_3(%arg0: i32) -> (i32, i32) {
    %c0_i32 = arith.constant 0 : i32
    %c0_i32_0 = arith.constant 0 : i32
    %c0_i32_1 = arith.constant 0 : i32
    return %c0_i32, %c0_i32_0 : i32, i32
  }
  func.func @transform_4(%arg0: i32) -> (i32, i32) {
    %c0_i32 = arith.constant 0 : i32
    %c0_i32_0 = arith.constant 0 : i32
    %c0_i32_1 = arith.constant 0 : i32
    return %c0_i32, %c0_i32_0 : i32, i32
  }
  func.func @transform_5(%arg0: i32) -> (i32, i32) {
    %c0_i32 = arith.constant 0 : i32
    %c0_i32_0 = arith.constant 0 : i32
    %c0_i32_1 = arith.constant 0 : i32
    return %c0_i32, %c0_i32_0 : i32, i32
  }
  func.func @transform_6(%arg0: i32) -> (i32, i32) {
    %c0_i32 = arith.constant 0 : i32
    %c0_i32_0 = arith.constant 0 : i32
    %c0_i32_1 = arith.constant 0 : i32
    return %c0_i32, %c0_i32_0 : i32, i32
  }
  func.func @transform_7(%arg0: i32) -> (i32, i32) {
    %c0_i32 = arith.constant 0 : i32
    %c0_i32_0 = arith.constant 0 : i32
    return %arg0, %c0_i32 : i32, i32
  }
  func.func @transform_8(%arg0: i32) -> (i32, i32) {
    %c0_i32 = arith.constant 0 : i32
    %c0_i32_0 = arith.constant 0 : i32
    return %arg0, %c0_i32 : i32, i32
  }
}

</mosaic_0001>

<llo_original>
// kernel: tpu_custom_call.1
$region0: #{tpu_custom_call.1}
  #allocation0 [shape = 'u32[]', space=smem, size = 0x4, offset = 0x4, fixed_abs, tag = 'smem constant byte address 0x4 - core index']
  #allocation1 [shape = 'u32[72,128]{1,0:T(1,128)}', space=vmem, size = 0x9000, scoped, tag = 'internal scratch']
  %s0 = inlined_call_operand.hbm [shape: f32[8,16], index: 0, kind: input, shape index: {}]
  %s1 = inlined_call_operand.hbm [shape: f32[16,128], index: 1, kind: input, shape index: {}]
  %s2 = inlined_call_operand.vmem [shape: f32[1,128], index: 2, kind: input, shape index: {}]
  %s3 = inlined_call_operand.hbm [shape: f32[128,128], index: 3, kind: input, shape index: {}]
  %s4 = inlined_call_operand.hbm [shape: f32[1,128], index: 4, kind: input, shape index: {}]
  %s5 = inlined_call_operand.hbm [shape: f32[128,256], index: 5, kind: input, shape index: {}]
  %s6 = inlined_call_operand.vmem [shape: f32[1,256], index: 6, kind: input, shape index: {}]
  %s7 = inlined_call_operand.hbm [shape: f32[8,8], index: 7, kind: input, shape index: {}]
  %s8 = inlined_call_operand.hbm [shape: f32[8,128], index: 8, kind: output, shape index: {}]
  %s9 = sld [smem:[#allocation0]]
  $region66: #{tpu_custom_call.1} parent=0
    _
  %s11 = ssub.s32 1, %s9
  %s12 = scalar_select 0, %s11, %s9
  $region1: #{tpu_custom_call.1} parent=0
    #allocation2 [shape = 'u8[4096]{0}', space=vmem, size = 0x1000, scoped, tag = 'input window, operand 0, single buffered']
    #allocation3 [shape = 's32[1]{0}', space=sflag, size = 0x4, scoped, tag = 'scoped memory for tpu_custom_call.1']
    #allocation4 [shape = 's32[1]{0}', space=sflag, size = 0x4, scoped, tag = 'scoped memory for tpu_custom_call.1']
    #allocation5 [shape = 'u8[8192]{0}', space=vmem, size = 0x2000, scoped, tag = 'input window, operand 1, single buffered']
    #allocation6 [shape = 's32[1]{0}', space=sflag, size = 0x4, scoped, tag = 'scoped memory for tpu_custom_call.1']
    #allocation7 [shape = 'u8[65536]{0}', space=vmem, size = 0x10000, scoped, tag = 'input window, operand 3, single buffered']
    #allocation8 [shape = 'u8[512]{0}', space=vmem, size = 0x400, scoped, tag = 'input window, operand 4, single buffered']
    #allocation9 [shape = 's32[1]{0}', space=sflag, size = 0x4, scoped, tag = 'scoped memory for tpu_custom_call.1']
    #allocation10 [shape = 'u8[131072]{0}', space=vmem, size = 0x20000, scoped, tag = 'input window, operand 5, single buffered']
    #allocation11 [shape = 'u8[4096]{0}', space=vmem, size = 0x1000, scoped, tag = 'input window, operand 7, single buffered']
    #allocation12 [shape = 's32[1]{0}', space=sflag, size = 0x4, scoped, tag = 'scoped memory for tpu_custom_call.1']
    #allocation13 [shape = 'u8[4096]{0}', space=vmem, size = 0x1000, scoped, tag = 'output window, operand 0, single buffered']
    %13 = vsyncpa [#allocation3], 0
    %14 = vsyncpa [#allocation6], 0
    %15 = vsyncpa [#allocation9], 0
    %16 = vsyncpa [#allocation12], 0
    %17 = vsyncpa [#allocation4], 0
    // Predicated region
    $region2: #{tpu_custom_call.1} parent=1 // pred_check
      _
    $region3: #{tpu_custom_call.1} parent=1 // pred_check_branch
      %19 = sbr.rel (0) target = $region5
    $region4: #{tpu_custom_call.1} parent=1 // pred_region
      %21 = vsyncadd [#allocation3], 0
      %s23 = sshll.u32 %s0, 4
      %s24 = int_to_ptr.hbm [resolvable:$true] %s23
      %s25 = sshll.u32 [#allocation2], 4
      %s26 = int_to_ptr.vmem [resolvable:$true] %s25
      %28 = dma.hbm_to_vmem [thread:$0]  %s24, 128, %s26, [#allocation3]
    $region5: #{tpu_custom_call.1} parent=1 // pred_fallthru
      _
    // Predicated region
    $region6: #{tpu_custom_call.1} parent=1 // pred_check
      _
    $region7: #{tpu_custom_call.1} parent=1 // pred_check_branch
      %30 = sbr.rel (0) target = $region9
    $region8: #{tpu_custom_call.1} parent=1 // pred_region
      %32 = vsyncadd [#allocation6], 0
      %s33 = sshll.u32 %s1, 4
      %s34 = int_to_ptr.hbm [resolvable:$true] %s33
      %s35 = sshll.u32 [#allocation5], 4
      %s36 = int_to_ptr.vmem [resolvable:$true] %s35
      %41 = dma.hbm_to_vmem [thread:$0]  %s34, 256, %s36, [#allocation6], 128, 128, 8
    $region9: #{tpu_custom_call.1} parent=1 // pred_fallthru
      _
    // Predicated region
    $region10: #{tpu_custom_call.1} parent=1 // pred_check
      _
    $region11: #{tpu_custom_call.1} parent=1 // pred_check_branch
      %43 = sbr.rel (0) target = $region13
    $region12: #{tpu_custom_call.1} parent=1 // pred_region
      _
    $region13: #{tpu_custom_call.1} parent=1 // pred_fallthru
      _
    // Predicated region
    $region14: #{tpu_custom_call.1} parent=1 // pred_check
      _
    $region15: #{tpu_custom_call.1} parent=1 // pred_check_branch
      %45 = sbr.rel (0) target = $region17
    $region16: #{tpu_custom_call.1} parent=1 // pred_region
      %47 = vsyncadd [#allocation6], 0
      %s48 = sshll.u32 %s3, 4
      %s49 = int_to_ptr.hbm [resolvable:$true] %s48
      %s50 = sshll.u32 [#allocation7], 4
      %s51 = int_to_ptr.vmem [resolvable:$true] %s50
      %56 = dma.hbm_to_vmem [thread:$0]  %s49, 2048, %s51, [#allocation6], 128, 128, 8
    $region17: #{tpu_custom_call.1} parent=1 // pred_fallthru
      _
    // Predicated region
    $region18: #{tpu_custom_call.1} parent=1 // pred_check
      _
    $region19: #{tpu_custom_call.1} parent=1 // pred_check_branch
      %58 = sbr.rel (0) target = $region21
    $region20: #{tpu_custom_call.1} parent=1 // pred_region
      %60 = vsyncadd [#allocation9], 0
      %s62 = sshll.u32 %s4, 4
      %s63 = int_to_ptr.hbm [resolvable:$true] %s62
      %s64 = sshll.u32 [#allocation8], 4
      %s65 = int_to_ptr.vmem [resolvable:$true] %s64
      %67 = dma.hbm_to_vmem [thread:$0]  %s63, 16, %s65, [#allocation9]
    $region21: #{tpu_custom_call.1} parent=1 // pred_fallthru
      _
    // Predicated region
    $region22: #{tpu_custom_call.1} parent=1 // pred_check
      _
    $region23: #{tpu_custom_call.1} parent=1 // pred_check_branch
      %69 = sbr.rel (0) target = $region25
    $region24: #{tpu_custom_call.1} parent=1 // pred_region
      %71 = vsyncadd [#allocation9], 0
      %s72 = sshll.u32 %s5, 4
      %s73 = int_to_ptr.hbm [resolvable:$true] %s72
      %s74 = sshll.u32 [#allocation10], 4
      %s75 = int_to_ptr.vmem [resolvable:$true] %s74
      %80 = dma.hbm_to_vmem [thread:$0]  %s73, 4096, %s75, [#allocation9], 256, 256, 16
    $region25: #{tpu_custom_call.1} parent=1 // pred_fallthru
      _
    // Predicated region
    $region26: #{tpu_custom_call.1} parent=1 // pred_check
      _
    $region27: #{tpu_custom_call.1} parent=1 // pred_check_branch
      %82 = sbr.rel (0) target = $region29
    $region28: #{tpu_custom_call.1} parent=1 // pred_region
      _
    $region29: #{tpu_custom_call.1} parent=1 // pred_fallthru
      _
    // Predicated region
    $region30: #{tpu_custom_call.1} parent=1 // pred_check
      _
    $region31: #{tpu_custom_call.1} parent=1 // pred_check_branch
      %84 = sbr.rel (0) target = $region33
    $region32: #{tpu_custom_call.1} parent=1 // pred_region
      %86 = vsyncadd [#allocation12], 0
      %s88 = sshll.u32 %s7, 4
      %s89 = int_to_ptr.hbm [resolvable:$true] %s88
      %s90 = sshll.u32 [#allocation11], 4
      %s91 = int_to_ptr.vmem [resolvable:$true] %s90
      %93 = dma.hbm_to_vmem [thread:$0]  %s89, 128, %s91, [#allocation12]
    $region33: #{tpu_custom_call.1} parent=1 // pred_fallthru
      _
    // Predicated region
    $region34: #{tpu_custom_call.1} parent=1 // pred_check
      _
    $region35: #{tpu_custom_call.1} parent=1 // pred_check_branch
      %95 = sbr.rel (0) target = $region37
    $region36: #{tpu_custom_call.1} parent=1 // pred_region
      %97 = dma.done [#allocation3], 128
    $region37: #{tpu_custom_call.1} parent=1 // pred_fallthru
      _
    // Predicated region
    $region38: #{tpu_custom_call.1} parent=1 // pred_check
      _
    $region39: #{tpu_custom_call.1} parent=1 // pred_check_branch
      %99 = sbr.rel (0) target = $region41
    $region40: #{tpu_custom_call.1} parent=1 // pred_region
      %101 = dma.done [#allocation6], 256
    $region41: #{tpu_custom_call.1} parent=1 // pred_fallthru
      _
    // Predicated region
    $region42: #{tpu_custom_call.1} parent=1 // pred_check
      _
    $region43: #{tpu_custom_call.1} parent=1 // pred_check_branch
      %103 = sbr.rel (0) target = $region45
    $region44: #{tpu_custom_call.1} parent=1 // pred_region
      %105 = dma.done [#allocation6], 2048
    $region45: #{tpu_custom_call.1} parent=1 // pred_fallthru
      _
    // Predicated region
    $region46: #{tpu_custom_call.1} parent=1 // pred_check
      _
    $region47: #{tpu_custom_call.1} parent=1 // pred_check_branch
      %107 = sbr.rel (0) target = $region49
    $region48: #{tpu_custom_call.1} parent=1 // pred_region
      %109 = dma.done [#allocation9], 16
    $region49: #{tpu_custom_call.1} parent=1 // pred_fallthru
      _
    // Predicated region
    $region50: #{tpu_custom_call.1} parent=1 // pred_check
      _
    $region51: #{tpu_custom_call.1} parent=1 // pred_check_branch
      %111 = sbr.rel (0) target = $region53
    $region52: #{tpu_custom_call.1} parent=1 // pred_region
      %113 = dma.done [#allocation9], 4096
    $region53: #{tpu_custom_call.1} parent=1 // pred_fallthru
      _
    // Predicated region
    $region54: #{tpu_custom_call.1} parent=1 // pred_check
      _
    $region55: #{tpu_custom_call.1} parent=1 // pred_check_branch
      %115 = sbr.rel (0) target = $region57
    $region56: #{tpu_custom_call.1} parent=1 // pred_region
      %117 = dma.done [#allocation12], 128
    $region57: #{tpu_custom_call.1} parent=1 // pred_fallthru
      _
    %v118 = vld [vmem:[#allocation2] sm:$0xff]
    %v119 = vld [vmem:[#allocation5] sm:$0xff]
    %v120 = vld [vmem:[#allocation5 + $0x8] sm:$0xff]
    %v121 = vld [vmem:[%s2] sm:$0x1]
    %v123 = vperm.slane %v121, 0
    %vm125 = vcmask 130048
    %v127 = vsel %vm125, %v118, 0
    %129 = vmatpush.msra.mxu0 0.0
    %130 = vmatpush.msra.mxu0 0.0
    %131 = vmatpush.msra.mxu0 0.0
    %132 = vmatpush.msra.mxu0 0.0
    %133 = vmatpush.msra.mxu0 0.0
    %134 = vmatpush.msra.mxu0 0.0
    %135 = vmatpush.msra.mxu0 0.0
    %136 = vmatpush.msra.mxu0 0.0
    %137 = vmatpush.msra.mxu0 0.0
    %138 = vmatpush.msra.mxu0 0.0
    %139 = vmatpush.msra.mxu0 0.0
    %140 = vmatpush.msra.mxu0 0.0
    %141 = vmatpush.msra.mxu0 0.0
    %142 = vmatpush.msra.mxu0 0.0
    %143 = vmatpush.msra.mxu0 %v120
    %144 = vmatpush.msra.mxu0 %v119
    %145 = vmatmul.f32.gmra.mxu0 %v127
    %v146 = vpop.f32.mrf.mxu0
    %v147 = vadd.f32 %v123, %v146
    %148 = vdwg.mxu0
    %v149 = vmax.f32 %v147, 0.0
    %v150 = vld [vmem:[#allocation7] sm:$0xff]
    %v151 = vld [vmem:[#allocation7 + $0x8] sm:$0xff]
    %v152 = vld [vmem:[#allocation7 + $0x10] sm:$0xff]
    %v153 = vld [vmem:[#allocation7 + $0x18] sm:$0xff]
    %v154 = vld [vmem:[#allocation7 + $0x20] sm:$0xff]
    %v155 = vld [vmem:[#allocation7 + $0x28] sm:$0xff]
    %v156 = vld [vmem:[#allocation7 + $0x30] sm:$0xff]
    %v157 = vld [vmem:[#allocation7 + $0x38] sm:$0xff]
    %v158 = vld [vmem:[#allocation7 + $0x40] sm:$0xff]
    %v159 = vld [vmem:[#allocation7 + $0x48] sm:$0xff]
    %v160 = vld [vmem:[#allocation7 + $0x50] sm:$0xff]
    %v161 = vld [vmem:[#allocation7 + $0x58] sm:$0xff]
    %v162 = vld [vmem:[#allocation7 + $0x60] sm:$0xff]
    %v163 = vld [vmem:[#allocation7 + $0x68] sm:$0xff]
    %v164 = vld [vmem:[#allocation7 + $0x70] sm:$0xff]
    %v165 = vld [vmem:[#allocation7 + $0x78] sm:$0xff]
    %v166 = vld [vmem:[#allocation8] sm:$0x1]
    %v168 = vperm.slane %v166, 0
    %170 = vmatpush.msra.mxu0 %v165
    %171 = vmatpush.msra.mxu0 %v164
    %172 = vmatpush.msra.mxu0 %v163
    %173 = vmatpush.msra.mxu0 %v162
    %174 = vmatpush.msra.mxu0 %v161
    %175 = vmatpush.msra.mxu0 %v160
    %176 = vmatpush.msra.mxu0 %v159
    %177 = vmatpush.msra.mxu0 %v158
    %178 = vmatpush.msra.mxu0 %v157
    %179 = vmatpush.msra.mxu0 %v156
    %180 = vmatpush.msra.mxu0 %v155
    %181 = vmatpush.msra.mxu0 %v154
    %182 = vmatpush.msra.mxu0 %v153
    %183 = vmatpush.msra.mxu0 %v152
    %184 = vmatpush.msra.mxu0 %v151
    %185 = vmatpush.msra.mxu0 %v150
    %186 = vmatmul.f32.gmra.mxu0 %v149
    %v187 = vpop.f32.mrf.mxu0
    %v188 = vadd.f32 %v168, %v187
    %189 = vdwg.mxu0
    %v190 = vmax.f32 %v188, 0.0
    %v191 = vld [vmem:[#allocation10] sm:$0xff]
    %v192 = vld [vmem:[#allocation10 + $0x8] sm:$0xff]
    %v193 = vld [vmem:[#allocation10 + $0x10] sm:$0xff]
    %v194 = vld [vmem:[#allocation10 + $0x18] sm:$0xff]
    %v195 = vld [vmem:[#allocation10 + $0x20] sm:$0xff]
    %v196 = vld [vmem:[#allocation10 + $0x28] sm:$0xff]
    %v197 = vld [vmem:[#allocation10 + $0x30] sm:$0xff]
    %v198 = vld [vmem:[#allocation10 + $0x38] sm:$0xff]
    %v199 = vld [vmem:[#allocation10 + $0x40] sm:$0xff]
    %v200 = vld [vmem:[#allocation10 + $0x48] sm:$0xff]
    %v201 = vld [vmem:[#allocation10 + $0x50] sm:$0xff]
    %v202 = vld [vmem:[#allocation10 + $0x58] sm:$0xff]
    %v203 = vld [vmem:[#allocation10 + $0x60] sm:$0xff]
    %v204 = vld [vmem:[#allocation10 + $0x68] sm:$0xff]
    %v205 = vld [vmem:[#allocation10 + $0x70] sm:$0xff]
    %v206 = vld [vmem:[#allocation10 + $0x78] sm:$0xff]
    %v207 = vld [vmem:[#allocation10 + $0x80] sm:$0xff]
    %v208 = vld [vmem:[#allocation10 + $0x88] sm:$0xff]
    %v209 = vld [vmem:[#allocation10 + $0x90] sm:$0xff]
    %v210 = vld [vmem:[#allocation10 + $0x98] sm:$0xff]
    %v211 = vld [vmem:[#allocation10 + $0xa0] sm:$0xff]
    %v212 = vld [vmem:[#allocation10 + $0xa8] sm:$0xff]
    %v213 = vld [vmem:[#allocation10 + $0xb0] sm:$0xff]
    %v214 = vld [vmem:[#allocation10 + $0xb8] sm:$0xff]
    %v215 = vld [vmem:[#allocation10 + $0xc0] sm:$0xff]
    %v216 = vld [vmem:[#allocation10 + $0xc8] sm:$0xff]
    %v217 = vld [vmem:[#allocation10 + $0xd0] sm:$0xff]
    %v218 = vld [vmem:[#allocation10 + $0xd8] sm:$0xff]
    %v219 = vld [vmem:[#allocation10 + $0xe0] sm:$0xff]
    %v220 = vld [vmem:[#allocation10 + $0xe8] sm:$0xff]
    %v221 = vld [vmem:[#allocation10 + $0xf0] sm:$0xff]
    %v222 = vld [vmem:[#allocation10 + $0xf8] sm:$0xff]
    %v223 = vld [vmem:[%s6] sm:$0x3]
    %v225 = vperm.slane %v223, 0
    %v226 = vperm.slane %v223, 1
    %229 = vmatpush.msra.mxu0 %v221
    %230 = vmatpush.msra.mxu0 %v219
    %231 = vmatpush.msra.mxu0 %v217
    %232 = vmatpush.msra.mxu0 %v215
    %233 = vmatpush.msra.mxu0 %v213
    %234 = vmatpush.msra.mxu0 %v211
    %235 = vmatpush.msra.mxu0 %v209
    %236 = vmatpush.msra.mxu0 %v207
    %237 = vmatpush.msra.mxu0 %v205
    %238 = vmatpush.msra.mxu0 %v203
    %239 = vmatpush.msra.mxu0 %v201
    %240 = vmatpush.msra.mxu0 %v199
    %241 = vmatpush.msra.mxu0 %v197
    %242 = vmatpush.msra.mxu0 %v195
    %243 = vmatpush.msra.mxu0 %v193
    %244 = vmatpush.msra.mxu0 %v191
    %245 = vmatmul.f32.gmra.mxu0 %v190
    %v246 = vpop.f32.mrf.mxu0
    %v247 = vadd.f32 %v225, %v246
    %248 = vdwg.mxu0
    %249 = vmatpush.msra.mxu0 %v222
    %250 = vmatpush.msra.mxu0 %v220
    %251 = vmatpush.msra.mxu0 %v218
    %252 = vmatpush.msra.mxu0 %v216
    %253 = vmatpush.msra.mxu0 %v214
    %254 = vmatpush.msra.mxu0 %v212
    %255 = vmatpush.msra.mxu0 %v210
    %256 = vmatpush.msra.mxu0 %v208
    %257 = vmatpush.msra.mxu0 %v206
    %258 = vmatpush.msra.mxu0 %v204
    %259 = vmatpush.msra.mxu0 %v202
    %260 = vmatpush.msra.mxu0 %v200
    %261 = vmatpush.msra.mxu0 %v198
    %262 = vmatpush.msra.mxu0 %v196
    %263 = vmatpush.msra.mxu0 %v194
    %264 = vmatpush.msra.mxu0 %v192
    %265 = vmatmul.f32.gmra.mxu0 %v190
    %v266 = vpop.f32.mrf.mxu0
    %v267 = vadd.f32 %v226, %v266
    %268 = vdwg.mxu0
    %v269 = vmax.f32 %v267, -2.0
    %v270 = vmin.f32 %v269, 20.0
    %v271 = vmul.f32 %v270, 1.442695
    %v272 = vpow.pop %v271
    %v273 = vld [vmem:[#allocation11] sm:$0xff]
    %v274 = vlaneseq
    %v275 = vshrl.u32 %v274, 7
    %v276 = vlaneseq
    %v277 = vand.u32 %v276, 127
    %vm278 = vcmp.eq.s32.totalorder %v275, %v277
    %v279 = vsel %vm278, 1, 0
    %v280 = vcvt.s32.f32 %v279
    %vm281 = vcmask 64512
    %v283 = vsel %vm281, %v273, 0
    %285 = vmatpush.msra.mxu0 0.0
    %286 = vmatpush.msra.mxu0 0.0
    %287 = vmatpush.msra.mxu0 0.0
    %288 = vmatpush.msra.mxu0 0.0
    %289 = vmatpush.msra.mxu0 0.0
    %290 = vmatpush.msra.mxu0 0.0
    %291 = vmatpush.msra.mxu0 0.0
    %292 = vmatpush.msra.mxu0 0.0
    %293 = vmatpush.msra.mxu0 0.0
    %294 = vmatpush.msra.mxu0 0.0
    %295 = vmatpush.msra.mxu0 0.0
    %296 = vmatpush.msra.mxu0 0.0
    %297 = vmatpush.msra.mxu0 0.0
    %298 = vmatpush.msra.mxu0 0.0
    %299 = vmatpush.msra.mxu0 0.0
    %300 = vmatpush.msra.mxu0 %v280
    %301 = vmatmul.f32.gmra.mxu0 %v283
    %v302 = vpop.f32.mrf.mxu0
    %v303 = vadd.f32 0.0, %v302
    %304 = vdwg.mxu0
    %v305 = vmul.f32 %v272, %v303
    %v306 = vadd.f32 %v247, %v305
    %v307 = vand.u32 2147483647, %v306
    %v308 = vmul.f32 %v307, -2.0
    %v309 = vmul.f32 %v308, 1.442695
    %v310 = vpow.pop %v309
    %v311 = vadd.f32 %v310, 1.0
    %v312 = vrcp.pop %v311
    %v313 = vmul.f32 %v311, %v312
    %v314 = vsub.f32 2.0, %v313
    %v315 = vmul.f32 %v312, %v314
    %vm316 = vcmp.ge.f32.partialorder %v306, 0.0
    %v317 = vsel %vm316, 1.0, -1.0
    %v318 = vsub.f32 1.0, %v310
    %v319 = vmul.f32 %v317, %v318
    %v320 = vmul.f32 %v319, %v315
    %v321 = vmul.f32 %v320, 2.0
    %v322 = vadd.f32 %v310, 1.0
    %v323 = vlog2.pop %v322
    %v324 = vmul.f32 %v323, 0.6931472
    %v325 = vmul.f32 -0.5, %v310
    %v326 = vadd.f32 %v325, 1.0
    %v327 = vmul.f32 %v326, %v310
    %v328 = vand.u32 2147483647, %v310
    %vm329 = vcmp.lt.f32.partialorder %v328, 0.0004427343
    %v330 = vsel %vm329, %v327, %v324
    %v331 = vsub.f32 0.0, %v306
    %v332 = vmax.f32 %v331, 0.0
    %v333 = vmul.f32 %v332, 2.0
    %v334 = vadd.f32 %v330, %v333
    %v335 = vmul.f32 %v303, %v303
    %v336 = vmul.f32 %v335, -0.5
    %v337 = vsub.f32 %v336, %v270
    %v338 = vsub.f32 %v337, 0.9189385
    %v339 = vsub.f32 0.6931472, %v306
    %v340 = vsub.f32 %v339, %v334
    %v341 = vmul.f32 %v340, 2.0
    %v342 = vsub.f32 %v338, %v341
    %vm343 = vcmp.lt.s32.totalorder %v277, 8
    %v344 = vsel %vm343, %v342, 0.0
    %345 = vadd.xlane.f32.xlu0 %v344
    %v346 = vpop.xlane.xlu0 %345
    %vm347 = vcmp.eq.s32.totalorder %v277, 8
    %v348 = vsel %vm347, %v346, %v321
    %349 = vst [vmem:[#allocation13] sm:$0xff] %v348
    // Predicated region
    $region58: #{tpu_custom_call.1} parent=1 // pred_check
      _
    $region59: #{tpu_custom_call.1} parent=1 // pred_check_branch
      %351 = sbr.rel (0) target = $region61
    $region60: #{tpu_custom_call.1} parent=1 // pred_region
      %353 = vsyncadd [#allocation4], 0
      %s355 = sshll.u32 [#allocation13], 4
      %s356 = int_to_ptr.vmem [resolvable:$true] %s355
      %s357 = sshll.u32 %s8, 4
      %s358 = int_to_ptr.hbm [resolvable:$true] %s357
      %360 = dma.vmem_to_hbm [thread:$0]  %s356, 128, %s358, [#allocation4]
    $region61: #{tpu_custom_call.1} parent=1 // pred_fallthru
      _
    // Predicated region
    $region62: #{tpu_custom_call.1} parent=1 // pred_check
      _
    $region63: #{tpu_custom_call.1} parent=1 // pred_check_branch
      %362 = sbr.rel (0) target = $region65
    $region64: #{tpu_custom_call.1} parent=1 // pred_region
      %364 = dma.done [#allocation4], 128
    $region65: #{tpu_custom_call.1} parent=1 // pred_fallthru
      _
    %365 = vsyncpa [#allocation3], 1
    %366 = vsyncpa [#allocation6], 1
    %367 = vsyncpa [#allocation9], 1
    %368 = vsyncpa [#allocation12], 1
    %369 = vsyncpa [#allocation4], 1

</llo_original>
